<compile_context>
chip_gen: v6e
topology: v6e:2x2x1
jax: 0.10.0
libtpu: 0.0.40
codegen_flags: <defaults>
</compile_context>

<pallas_src>
import jax
import jax.numpy as jnp
from jax.experimental import pallas as pl
from jax.experimental.pallas import tpu as pltpu

IN_FEATURES = 3
HIDDEN = 64
OUT_FEATURES = 28 * 28          # 784
OUT_PADDED = 896                # 7 * 128 -> lane-dense output slab


def _round_up(n, m):
    return ((n + m - 1) // m) * m


def _decoder_kernel(x_ref, w1_ref, b1_ref, w2_ref, b2_ref, o_ref):
    # --- Layer 1: Linear(3, 64) + ReLU, done on the VPU (K=3 matmul would waste
    #     an MXU push/pop for essentially no work).
    x = x_ref[...]                                   # (TB, 3) f32
    w1 = w1_ref[...]                                 # (3, 64) f32
    h = (x[:, 0:1] * w1[0:1, :]
         + x[:, 1:2] * w1[1:2, :]
         + x[:, 2:3] * w1[2:3, :])                   # (TB, 64) f32
    h = jnp.maximum(h + b1_ref[...], 0.0)

    # --- Layer 2: Linear(64, 896-padded) on the MXU, bf16 inputs, f32 accumulate.
    y = jnp.dot(h.astype(jnp.bfloat16), w2_ref[...],
                preferred_element_type=jnp.float32)  # (TB, 896) f32
    o_ref[...] = (y + b2_ref[...]).astype(o_ref.dtype)


def prepare_params(w1, b1, w2, b2):
    """One-time prep: pad second layer to 896 lanes and cast w2 to bf16."""
    w2p = jnp.zeros((HIDDEN, OUT_PADDED), jnp.bfloat16)
    w2p = w2p.at[:, :OUT_FEATURES].set(w2.astype(jnp.bfloat16))
    b2p = jnp.zeros((1, OUT_PADDED), jnp.float32)
    b2p = b2p.at[:, :OUT_FEATURES].set(b2.astype(jnp.float32))
    return w1.astype(jnp.float32), b1.astype(jnp.float32), w2p, b2p


def decoder_forward(x, w1, b1, w2p, b2p, *, tb=256):
    """x: (B, 3) f32 -> (B, 784) f32.  w2p/b2p must come from prepare_params."""
    B = x.shape[0]
    # Batch tile: multiple of 8 sublanes, capped so (TB x 896 f32) x 2 buffers plus
    # the ~115 KB resident weights stays far under VMEM on every generation.
    TB = min(tb, _round_up(B, 8))
    B_pad = _round_up(B, TB)
    if B_pad != B:
        x = jnp.pad(x, ((0, B_pad - B), (0, 0)))

    grid = (B_pad // TB,)

    flops = 2 * B_pad * (IN_FEATURES * HIDDEN + HIDDEN * OUT_PADDED)
    bytes_accessed = (B_pad * IN_FEATURES * 4          # x
                      + IN_FEATURES * HIDDEN * 4       # w1
                      + HIDDEN * 4                     # b1
                      + HIDDEN * OUT_PADDED * 2        # w2 (bf16)
                      + OUT_PADDED * 4                 # b2
                      + B_pad * OUT_PADDED * 4)        # out

    out = pl.pallas_call(
        _decoder_kernel,
        out_shape=jax.ShapeDtypeStruct((B_pad, OUT_PADDED), jnp.float32),
        grid_spec=pltpu.PrefetchScalarGridSpec(
            num_scalar_prefetch=0,
            grid=grid,
            in_specs=[
                pl.BlockSpec((TB, IN_FEATURES), lambda i: (i, 0)),       # x: pipelined
                pl.BlockSpec((IN_FEATURES, HIDDEN), lambda i: (0, 0)),   # w1: resident
                pl.BlockSpec((1, HIDDEN), lambda i: (0, 0)),             # b1: resident
                pl.BlockSpec((HIDDEN, OUT_PADDED), lambda i: (0, 0)),    # w2: resident
                pl.BlockSpec((1, OUT_PADDED), lambda i: (0, 0)),         # b2: resident
            ],
            out_specs=pl.BlockSpec((TB, OUT_PADDED), lambda i: (i, 0)),
        ),
        compiler_params=pltpu.CompilerParams(
            dimension_semantics=("parallel",)),
        cost_estimate=pl.CostEstimate(
            flops=flops, transcendentals=0, bytes_accessed=bytes_accessed),
    )(x, w1, b1, w2p, b2p)

    # Strip batch padding and the 784->896 lane padding outside the kernel.
    return out[:B, :OUT_FEATURES]


def init_params(key):
    """Deterministic init mimicking PyTorch nn.Linear default (uniform +/- 1/sqrt(fan_in))."""
    k1, k2, k3, k4 = jax.random.split(key, 4)
    bound1 = 1.0 / jnp.sqrt(float(IN_FEATURES))
    bound2 = 1.0 / jnp.sqrt(float(HIDDEN))
    # Stored as (in_features, out_features) so the kernel computes x @ W
    # (equivalent to PyTorch's x @ W.T with W of shape (out, in)).
    w1 = jax.random.uniform(k1, (IN_FEATURES, HIDDEN), jnp.float32, -bound1, bound1)
    b1 = jax.random.uniform(k2, (1, HIDDEN), jnp.float32, -bound1, bound1)
    w2 = jax.random.uniform(k3, (HIDDEN, OUT_FEATURES), jnp.float32, -bound2, bound2)
    b2 = jax.random.uniform(k4, (1, OUT_FEATURES), jnp.float32, -bound2, bound2)
    return w1, b1, w2, b2


if __name__ == "__main__":
    key = jax.random.PRNGKey(0)
    pkey, xkey = jax.random.split(key)
    w1, b1, w2, b2 = init_params(pkey)
    w1p, b1p, w2p, b2p = prepare_params(w1, b1, w2, b2)

    batch = 8
    x = jax.random.normal(xkey, (batch, IN_FEATURES), jnp.float32)

    out = decoder_forward(x, w1p, b1p, w2p, b2p)
    out = jax.block_until_ready(out)
    assert out.shape == (batch, OUT_FEATURES)

    # Reference in plain JAX, mirroring the kernel's numerics (bf16 second layer).
    h_ref = jnp.maximum(
        x[:, 0:1] * w1[0:1, :] + x[:, 1:2] * w1[1:2, :] + x[:, 2:3] * w1[2:3, :] + b1,
        0.0)
    ref = jnp.dot(h_ref.astype(jnp.bfloat16).astype(jnp.float32),
                  w2.astype(jnp.bfloat16).astype(jnp.float32),
                  precision=jax.lax.Precision.HIGHEST) + b2
    assert jnp.allclose(out, ref, atol=1e-3, rtol=1e-3)

    # Sanity vs. full-f32 math (looser, bf16 weight quantization error only).
    ref_f32 = jnp.maximum(x @ w1 + b1, 0.0) @ w2 + b2
    assert jnp.allclose(out, ref_f32, atol=5e-2, rtol=5e-2)

    print("KERNEL_OK")
</pallas_src>

<mosaic_0001>
module attributes {stable_mosaic.version = 11 : i64} {
  func.func @_decoder_kernel(%arg0: i32, %arg1: memref<8x3xf32, #tpu.memory_space<vmem>>, %arg2: memref<3x64xf32, #tpu.memory_space<vmem>>, %arg3: memref<1x64xf32, #tpu.memory_space<vmem>>, %arg4: memref<64x896xbf16, #tpu.memory_space<vmem>>, %arg5: memref<1x896xf32, #tpu.memory_space<vmem>>, %arg6: memref<8x896xf32, #tpu.memory_space<vmem>>) attributes {dimension_semantics = [#tpu.dimension_semantics<parallel>], iteration_bounds = array<i64: 1>, scalar_prefetch = 0 : i64, scratch_operands = 0 : i64, tpu.core_type = #tpu.core_type<tc>, window_params = [{transform_indices = @transform_0, window_bounds = array<i64: 8, 3>}, {pipeline_mode = #tpu.pipeline_mode<synchronous>, transform_indices = @transform_1, window_bounds = array<i64: 3, 64>}, {pipeline_mode = #tpu.pipeline_mode<synchronous>, transform_indices = @transform_2, window_bounds = array<i64: 1, 64>}, {pipeline_mode = #tpu.pipeline_mode<synchronous>, transform_indices = @transform_3, window_bounds = array<i64: 64, 896>}, {pipeline_mode = #tpu.pipeline_mode<synchronous>, transform_indices = @transform_4, window_bounds = array<i64: 1, 896>}, {transform_indices = @transform_5, window_bounds = array<i64: 8, 896>}]} {
    %c0 = arith.constant 0 : index
    %c0_0 = arith.constant 0 : index
    %0 = vector.load %arg1[%c0, %c0_0] : memref<8x3xf32, #tpu.memory_space<vmem>>, vector<8x3xf32>
    %c0_1 = arith.constant 0 : index
    %c0_2 = arith.constant 0 : index
    %1 = vector.load %arg2[%c0_1, %c0_2] : memref<3x64xf32, #tpu.memory_space<vmem>>, vector<3x64xf32>
    %2 = vector.extract_strided_slice %0 {offsets = [0, 0], sizes = [8, 1], strides = [1, 1]} : vector<8x3xf32> to vector<8x1xf32>
    %3 = vector.extract_strided_slice %1 {offsets = [0, 0], sizes = [1, 64], strides = [1, 1]} : vector<3x64xf32> to vector<1x64xf32>
    %4 = vector.broadcast %2 : vector<8x1xf32> to vector<8x64xf32>
    %5 = vector.broadcast %3 : vector<1x64xf32> to vector<8x64xf32>
    %6 = arith.mulf %4, %5 : vector<8x64xf32>
    %7 = vector.extract_strided_slice %0 {offsets = [0, 1], sizes = [8, 1], strides = [1, 1]} : vector<8x3xf32> to vector<8x1xf32>
    %8 = vector.extract_strided_slice %1 {offsets = [1, 0], sizes = [1, 64], strides = [1, 1]} : vector<3x64xf32> to vector<1x64xf32>
    %9 = vector.broadcast %7 : vector<8x1xf32> to vector<8x64xf32>
    %10 = vector.broadcast %8 : vector<1x64xf32> to vector<8x64xf32>
    %11 = arith.mulf %9, %10 : vector<8x64xf32>
    %12 = arith.addf %6, %11 : vector<8x64xf32>
    %13 = vector.extract_strided_slice %0 {offsets = [0, 2], sizes = [8, 1], strides = [1, 1]} : vector<8x3xf32> to vector<8x1xf32>
    %14 = vector.extract_strided_slice %1 {offsets = [2, 0], sizes = [1, 64], strides = [1, 1]} : vector<3x64xf32> to vector<1x64xf32>
    %15 = vector.broadcast %13 : vector<8x1xf32> to vector<8x64xf32>
    %16 = vector.broadcast %14 : vector<1x64xf32> to vector<8x64xf32>
    %17 = arith.mulf %15, %16 : vector<8x64xf32>
    %18 = arith.addf %12, %17 : vector<8x64xf32>
    %c0_3 = arith.constant 0 : index
    %c0_4 = arith.constant 0 : index
    %19 = vector.load %arg3[%c0_3, %c0_4] : memref<1x64xf32, #tpu.memory_space<vmem>>, vector<1x64xf32>
    %20 = vector.broadcast %19 : vector<1x64xf32> to vector<8x64xf32>
    %21 = arith.addf %18, %20 : vector<8x64xf32>
    %cst = arith.constant 0.000000e+00 : f32
    %22 = vector.broadcast %cst : f32 to vector<8x64xf32>
    %23 = arith.maximumf %21, %22 : vector<8x64xf32>
    %24 = arith.truncf %23 : vector<8x64xf32> to vector<8x64xbf16>
    %c0_5 = arith.constant 0 : index
    %c0_6 = arith.constant 0 : index
    %25 = vector.load %arg4[%c0_5, %c0_6] : memref<64x896xbf16, #tpu.memory_space<vmem>>, vector<64x896xbf16>
    %cst_7 = arith.constant dense<0.000000e+00> : vector<8x896xf32>
    %26 = tpu.matmul %24, %25, %cst_7 {dimension_numbers = #tpu.dot_dimension_numbers<[1], [0], [0], [1], [0, 0, 1, 1], [], []>} : vector<8x64xbf16>, vector<64x896xbf16>, vector<8x896xf32> -> vector<8x896xf32>
    %c0_8 = arith.constant 0 : index
    %c0_9 = arith.constant 0 : index
    %27 = vector.load %arg5[%c0_8, %c0_9] : memref<1x896xf32, #tpu.memory_space<vmem>>, vector<1x896xf32>
    %28 = vector.broadcast %27 : vector<1x896xf32> to vector<8x896xf32>
    %29 = arith.addf %26, %28 : vector<8x896xf32>
    %c0_10 = arith.constant 0 : index
    %c0_11 = arith.constant 0 : index
    %30 = vector.load %arg6[%c0_10, %c0_11] : memref<8x896xf32, #tpu.memory_space<vmem>>, vector<8x896xf32>
    tpu.vector_store %arg6[%c0_10, %c0_11], %29 {strides = array<i32>} : memref<8x896xf32, #tpu.memory_space<vmem>>, vector<8x896xf32>,
    return
  }
  func.func @transform_0(%arg0: i32) -> (i32, i32) {
    %c0_i32 = arith.constant 0 : i32
    %c0_i32_0 = arith.constant 0 : i32
    return %arg0, %c0_i32 : i32, i32
  }
  func.func @transform_1(%arg0: i32) -> (i32, i32) {
    %c0_i32 = arith.constant 0 : i32
    %c0_i32_0 = arith.constant 0 : i32
    %c0_i32_1 = arith.constant 0 : i32
    return %c0_i32, %c0_i32_0 : i32, i32
  }
  func.func @transform_2(%arg0: i32) -> (i32, i32) {
    %c0_i32 = arith.constant 0 : i32
    %c0_i32_0 = arith.constant 0 : i32
    %c0_i32_1 = arith.constant 0 : i32
    return %c0_i32, %c0_i32_0 : i32, i32
  }
  func.func @transform_3(%arg0: i32) -> (i32, i32) {
    %c0_i32 = arith.constant 0 : i32
    %c0_i32_0 = arith.constant 0 : i32
    %c0_i32_1 = arith.constant 0 : i32
    return %c0_i32, %c0_i32_0 : i32, i32
  }
  func.func @transform_4(%arg0: i32) -> (i32, i32) {
    %c0_i32 = arith.constant 0 : i32
    %c0_i32_0 = arith.constant 0 : i32
    %c0_i32_1 = arith.constant 0 : i32
    return %c0_i32, %c0_i32_0 : i32, i32
  }
  func.func @transform_5(%arg0: i32) -> (i32, i32) {
    %c0_i32 = arith.constant 0 : i32
    %c0_i32_0 = arith.constant 0 : i32
    return %arg0, %c0_i32 : i32, i32
  }
}

</mosaic_0001>

<llo_original>
// kernel: tpu_custom_call.1
$region0: #{tpu_custom_call.1}
  #allocation0 [shape = 'u32[]', space=smem, size = 0x4, offset = 0x4, fixed_abs, tag = 'smem constant byte address 0x4 - core index']
  #allocation1 [shape = 'u32[144,128]{1,0:T(1,128)}', space=vmem, size = 0x12000, scoped, tag = 'internal scratch']
  %s0 = inlined_call_operand.vmem [shape: f32[8,3], index: 0, kind: input, shape index: {}]
  %s1 = inlined_call_operand.vmem [shape: f32[3,64], index: 1, kind: input, shape index: {}]
  %s2 = inlined_call_operand.vmem [shape: f32[1,64], index: 2, kind: input, shape index: {}]
  %s3 = inlined_call_operand.hbm [shape: bf16[64,896], index: 3, kind: input, shape index: {}]
  %s4 = inlined_call_operand.vmem [shape: f32[1,896], index: 4, kind: input, shape index: {}]
  %s5 = inlined_call_operand.hbm [shape: f32[8,896], index: 5, kind: output, shape index: {}]
  %s6 = sld [smem:[#allocation0]]
  $region34: #{tpu_custom_call.1} parent=0
    _
  %s8 = ssub.s32 1, %s6
  %s9 = scalar_select 0, %s8, %s6
  $region1: #{tpu_custom_call.1} parent=0
    #allocation2 [shape = 'u8[114688]{0}', space=vmem, size = 0x1c000, scoped, tag = 'input window, operand 3, single buffered']
    #allocation3 [shape = 's32[1]{0}', space=sflag, size = 0x4, scoped, tag = 'scoped memory for tpu_custom_call.1']
    #allocation4 [shape = 's32[1]{0}', space=sflag, size = 0x4, scoped, tag = 'scoped memory for tpu_custom_call.1']
    #allocation5 [shape = 'u8[28672]{0}', space=vmem, size = 0x7000, scoped, tag = 'output window, operand 0, single buffered']
    %10 = vsyncpa [#allocation3], 0
    %11 = vsyncpa [#allocation4], 0
    // Predicated region
    $region2: #{tpu_custom_call.1} parent=1 // pred_check
      _
    $region3: #{tpu_custom_call.1} parent=1 // pred_check_branch
      %13 = sbr.rel (0) target = $region5
    $region4: #{tpu_custom_call.1} parent=1 // pred_region
      _
    $region5: #{tpu_custom_call.1} parent=1 // pred_fallthru
      _
    // Predicated region
    $region6: #{tpu_custom_call.1} parent=1 // pred_check
      _
    $region7: #{tpu_custom_call.1} parent=1 // pred_check_branch
      %15 = sbr.rel (0) target = $region9
    $region8: #{tpu_custom_call.1} parent=1 // pred_region
      _
    $region9: #{tpu_custom_call.1} parent=1 // pred_fallthru
      _
    // Predicated region
    $region10: #{tpu_custom_call.1} parent=1 // pred_check
      _
    $region11: #{tpu_custom_call.1} parent=1 // pred_check_branch
      %17 = sbr.rel (0) target = $region13
    $region12: #{tpu_custom_call.1} parent=1 // pred_region
      _
    $region13: #{tpu_custom_call.1} parent=1 // pred_fallthru
      _
    // Predicated region
    $region14: #{tpu_custom_call.1} parent=1 // pred_check
      _
    $region15: #{tpu_custom_call.1} parent=1 // pred_check_branch
      %19 = sbr.rel (0) target = $region17
    $region16: #{tpu_custom_call.1} parent=1 // pred_region
      %s21 = ssub.s32 3584, 3584
      %22 = vsyncadd [#allocation3], %s21
      %s23 = sshll.u32 [#allocation2], 4
      %s24 = int_to_ptr.vmem [resolvable:$true] %s23
      %29 = dma.hbm_to_vmem [thread:$0]  %s3, 3584, %s24, [#allocation3], 448, 448, 28
    $region17: #{tpu_custom_call.1} parent=1 // pred_fallthru
      _
    // Predicated region
    $region18: #{tpu_custom_call.1} parent=1 // pred_check
      _
    $region19: #{tpu_custom_call.1} parent=1 // pred_check_branch
      %31 = sbr.rel (0) target = $region21
    $region20: #{tpu_custom_call.1} parent=1 // pred_region
      _
    $region21: #{tpu_custom_call.1} parent=1 // pred_fallthru
      _
    // Predicated region
    $region22: #{tpu_custom_call.1} parent=1 // pred_check
      _
    $region23: #{tpu_custom_call.1} parent=1 // pred_check_branch
      %33 = sbr.rel (0) target = $region25
    $region24: #{tpu_custom_call.1} parent=1 // pred_region
      %34 = dma.done [#allocation3], 3584
    $region25: #{tpu_custom_call.1} parent=1 // pred_fallthru
      _
    %v36 = vld [vmem:[%s0] sm:$0xff]
    %v37 = vld [vmem:[%s1] sm:$0x7]
    %39 = vset.pattern.permute.xlu0 0
    %40 = vperm.xlu0 %39, %v36
    %v41 = vpop.permute.xlu0 %40
    %v43 = vlaneseq
    %v44 = vshrl.u32 %v43, 7
    %v45 = vsub.s32 0, %v44
    %v46 = vrot.slane %v37, %v45
    %v47 = vmul.f32 %v41, %v46
    %48 = vset.pattern.permute.xlu0 1
    %49 = vperm.xlu0 %48, %v36
    %v50 = vpop.permute.xlu0 %49
    %v52 = vlaneseq
    %v53 = vshrl.u32 %v52, 7
    %v54 = vsub.s32 1, %v53
    %v55 = vrot.slane %v37, %v54
    %v56 = vmul.f32 %v50, %v55
    %v57 = vadd.f32 %v47, %v56
    %58 = vset.pattern.permute.xlu0 2
    %59 = vperm.xlu0 %58, %v36
    %v60 = vpop.permute.xlu0 %59
    %v62 = vlaneseq
    %v63 = vshrl.u32 %v62, 7
    %v64 = vsub.s32 2, %v63
    %v65 = vrot.slane %v37, %v64
    %v66 = vmul.f32 %v60, %v65
    %v67 = vadd.f32 %v57, %v66
    %v68 = vld [vmem:[%s2] sm:$0x1]
    %v70 = vlaneseq
    %v71 = vshrl.u32 %v70, 7
    %v72 = vsub.s32 0, %v71
    %v73 = vrot.slane %v68, %v72
    %v75 = vadd.f32 %v67, %v73
    %v76 = vmax.f32 %v75, 0.0
    %v77 = vpack.c.bf16 %v76, %v76
    %v78 = vld [vmem:[#allocation2] sm:$0xff]
    %v79 = vld [vmem:[#allocation2 + $0x8] sm:$0xff]
    %v80 = vld [vmem:[#allocation2 + $0x10] sm:$0xff]
    %v81 = vld [vmem:[#allocation2 + $0x18] sm:$0xf]
    %v82 = vld [vmem:[#allocation2 + $0x1c] sm:$0xff]
    %v83 = vld [vmem:[#allocation2 + $0x24] sm:$0xff]
    %v84 = vld [vmem:[#allocation2 + $0x2c] sm:$0xff]
    %v85 = vld [vmem:[#allocation2 + $0x34] sm:$0xf]
    %v86 = vld [vmem:[#allocation2 + $0x38] sm:$0xff]
    %v87 = vld [vmem:[#allocation2 + $0x40] sm:$0xff]
    %v88 = vld [vmem:[#allocation2 + $0x48] sm:$0xff]
    %v89 = vld [vmem:[#allocation2 + $0x50] sm:$0xf]
    %v90 = vld [vmem:[#allocation2 + $0x54] sm:$0xff]
    %v91 = vld [vmem:[#allocation2 + $0x5c] sm:$0xff]
    %v92 = vld [vmem:[#allocation2 + $0x64] sm:$0xff]
    %v93 = vld [vmem:[#allocation2 + $0x6c] sm:$0xf]
    %v94 = vld [vmem:[#allocation2 + $0x70] sm:$0xff]
    %v95 = vld [vmem:[#allocation2 + $0x78] sm:$0xff]
    %v96 = vld [vmem:[#allocation2 + $0x80] sm:$0xff]
    %v97 = vld [vmem:[#allocation2 + $0x88] sm:$0xf]
    %v98 = vld [vmem:[#allocation2 + $0x8c] sm:$0xff]
    %v99 = vld [vmem:[#allocation2 + $0x94] sm:$0xff]
    %v100 = vld [vmem:[#allocation2 + $0x9c] sm:$0xff]
    %v101 = vld [vmem:[#allocation2 + $0xa4] sm:$0xf]
    %v102 = vld [vmem:[#allocation2 + $0xa8] sm:$0xff]
    %v103 = vld [vmem:[#allocation2 + $0xb0] sm:$0xff]
    %v104 = vld [vmem:[#allocation2 + $0xb8] sm:$0xff]
    %v105 = vld [vmem:[#allocation2 + $0xc0] sm:$0xf]
    %v106 = vld [vmem:[#allocation2 + $0xc4] sm:$0xff]
    %v107 = vld [vmem:[#allocation2 + $0xcc] sm:$0xff]
    %v108 = vld [vmem:[#allocation2 + $0xd4] sm:$0xff]
    %v109 = vld [vmem:[#allocation2 + $0xdc] sm:$0xf]
    %v110 = vld [vmem:[%s4] sm:$0xff]
    %v112 = vlaneseq
    %v113 = vshrl.u32 %v112, 7
    %v114 = vsub.s32 0, %v113
    %v115 = vrot.slane %v110, %v114
    %v116 = vlaneseq
    %v117 = vshrl.u32 %v116, 7
    %v118 = vsub.s32 1, %v117
    %v119 = vrot.slane %v110, %v118
    %v120 = vlaneseq
    %v121 = vshrl.u32 %v120, 7
    %v122 = vsub.s32 2, %v121
    %v123 = vrot.slane %v110, %v122
    %v124 = vlaneseq
    %v125 = vshrl.u32 %v124, 7
    %v126 = vsub.s32 3, %v125
    %v127 = vrot.slane %v110, %v126
    %v128 = vlaneseq
    %v129 = vshrl.u32 %v128, 7
    %v130 = vsub.s32 4, %v129
    %v131 = vrot.slane %v110, %v130
    %v132 = vlaneseq
    %v133 = vshrl.u32 %v132, 7
    %v134 = vsub.s32 5, %v133
    %v135 = vrot.slane %v110, %v134
    %v136 = vlaneseq
    %v137 = vshrl.u32 %v136, 7
    %v138 = vsub.s32 6, %v137
    %v139 = vrot.slane %v110, %v138
    %v179 = vunpack.c.l.b16 %v78
    %v180 = vunpack.c.h.b16 %v78
    %v181 = vunpack.c.l.b16 %v79
    %v182 = vunpack.c.h.b16 %v79
    %v183 = vunpack.c.l.b16 %v80
    %v184 = vunpack.c.h.b16 %v80
    %v185 = vunpack.c.l.b16 %v81
    %v186 = vunpack.c.l.b16 %v82
    %v187 = vunpack.c.h.b16 %v82
    %v188 = vunpack.c.l.b16 %v83
    %v189 = vunpack.c.h.b16 %v83
    %v190 = vunpack.c.l.b16 %v84
    %v191 = vunpack.c.h.b16 %v84
    %v192 = vunpack.c.l.b16 %v85
    %v193 = vunpack.c.l.b16 %v86
    %v194 = vunpack.c.h.b16 %v86
    %v195 = vunpack.c.l.b16 %v87
    %v196 = vunpack.c.h.b16 %v87
    %v197 = vunpack.c.l.b16 %v88
    %v198 = vunpack.c.h.b16 %v88
    %v199 = vunpack.c.l.b16 %v89
    %v200 = vunpack.c.l.b16 %v90
    %v201 = vunpack.c.h.b16 %v90
    %v202 = vunpack.c.l.b16 %v91
    %v203 = vunpack.c.h.b16 %v91
    %v204 = vunpack.c.l.b16 %v92
    %v205 = vunpack.c.h.b16 %v92
    %v206 = vunpack.c.l.b16 %v93
    %v207 = vunpack.c.l.b16 %v94
    %v208 = vunpack.c.h.b16 %v94
    %v209 = vunpack.c.l.b16 %v95
    %v210 = vunpack.c.h.b16 %v95
    %v211 = vunpack.c.l.b16 %v96
    %v212 = vunpack.c.h.b16 %v96
    %v213 = vunpack.c.l.b16 %v97
    %v214 = vunpack.c.l.b16 %v98
    %v215 = vunpack.c.h.b16 %v98
    %v216 = vunpack.c.l.b16 %v99
    %v217 = vunpack.c.h.b16 %v99
    %v218 = vunpack.c.l.b16 %v100
    %v219 = vunpack.c.h.b16 %v100
    %v220 = vunpack.c.l.b16 %v101
    %v221 = vunpack.c.l.b16 %v102
    %v222 = vunpack.c.h.b16 %v102
    %v223 = vunpack.c.l.b16 %v103
    %v224 = vunpack.c.h.b16 %v103
    %v225 = vunpack.c.l.b16 %v104
    %v226 = vunpack.c.h.b16 %v104
    %v227 = vunpack.c.l.b16 %v105
    %v228 = vunpack.c.l.b16 %v106
    %v229 = vunpack.c.h.b16 %v106
    %v230 = vunpack.c.l.b16 %v107
    %v231 = vunpack.c.h.b16 %v107
    %v232 = vunpack.c.l.b16 %v108
    %v233 = vunpack.c.h.b16 %v108
    %v234 = vunpack.c.l.b16 %v109
    %v235 = vpack.c.b16 %v186, %v179
    %v236 = vpack.c.b16 %v187, %v180
    %v237 = vpack.c.b16 %v188, %v181
    %v238 = vpack.c.b16 %v189, %v182
    %v239 = vpack.c.b16 %v190, %v183
    %v240 = vpack.c.b16 %v191, %v184
    %v241 = vpack.c.b16 %v192, %v185
    %v242 = vpack.c.b16 %v200, %v193
    %v243 = vpack.c.b16 %v201, %v194
    %v244 = vpack.c.b16 %v202, %v195
    %v245 = vpack.c.b16 %v203, %v196
    %v246 = vpack.c.b16 %v204, %v197
    %v247 = vpack.c.b16 %v205, %v198
    %v248 = vpack.c.b16 %v206, %v199
    %v249 = vpack.c.b16 %v214, %v207
    %v250 = vpack.c.b16 %v215, %v208
    %v251 = vpack.c.b16 %v216, %v209
    %v252 = vpack.c.b16 %v217, %v210
    %v253 = vpack.c.b16 %v218, %v211
    %v254 = vpack.c.b16 %v219, %v212
    %v255 = vpack.c.b16 %v220, %v213
    %v256 = vpack.c.b16 %v228, %v221
    %v257 = vpack.c.b16 %v229, %v222
    %v258 = vpack.c.b16 %v230, %v223
    %v259 = vpack.c.b16 %v231, %v224
    %v260 = vpack.c.b16 %v232, %v225
    %v261 = vpack.c.b16 %v233, %v226
    %v262 = vpack.c.b16 %v234, %v227
    %vm291 = vcmask 523264
    %v293 = vsel %vm291, %v77, 0
    %295 = vmatprep.subr.bf16.mxu0 0
    %296 = vmatpush1.bf16.msra.mxu0 0
    %297 = vmatprep.subr.bf16.mxu0 0
    %298 = vmatpush1.bf16.msra.mxu0 0
    %299 = vmatprep.subr.bf16.mxu0 0
    %300 = vmatpush1.bf16.msra.mxu0 0
    %301 = vmatprep.subr.bf16.mxu0 0
    %302 = vmatpush1.bf16.msra.mxu0 0
    %303 = vmatprep.subr.bf16.mxu0 %v257
    %304 = vmatpush1.bf16.msra.mxu0 %v256
    %305 = vmatprep.subr.bf16.mxu0 %v250
    %306 = vmatpush1.bf16.msra.mxu0 %v249
    %307 = vmatprep.subr.bf16.mxu0 %v243
    %308 = vmatpush1.bf16.msra.mxu0 %v242
    %309 = vmatprep.subr.bf16.mxu0 %v236
    %310 = vmatpush1.bf16.msra.mxu0 %v235
    %311 = vmatprep.subr.bf16.mxu0 0
    %312 = vmatpush2.bf16.msra.mxu0 0
    %313 = vmatprep.subr.bf16.mxu0 0
    %314 = vmatpush2.bf16.msra.mxu0 0
    %315 = vmatprep.subr.bf16.mxu0 0
    %316 = vmatpush2.bf16.msra.mxu0 0
    %317 = vmatprep.subr.bf16.mxu0 0
    %318 = vmatpush2.bf16.msra.mxu0 0
    %319 = vmatprep.subr.bf16.mxu0 0
    %320 = vmatpush2.bf16.msra.mxu0 0
    %321 = vmatprep.subr.bf16.mxu0 0
    %322 = vmatpush2.bf16.msra.mxu0 0
    %323 = vmatprep.subr.bf16.mxu0 0
    %324 = vmatpush2.bf16.msra.mxu0 0
    %325 = vmatprep.subr.bf16.mxu0 0
    %326 = vmatpush2.bf16.msra.mxu0 0
    %327 = vmatprep.mubr.bf16.mxu0 0
    %328 = vmatmul.mubr.bf16.gmra.mxu0 %v293
    %v329 = vpop.f32.mrf.mxu0
    %v330 = vadd.f32 %v115, %v329
    %v331 = vpop.f32.mrf.mxu0
    %v332 = vadd.f32 %v119, %v331
    %v333 = vpop.f32.mrf.mxu0
    %v334 = vpop.f32.mrf.mxu0
    %335 = vdwg.mxu0
    %336 = vmatprep.subr.bf16.mxu0 0
    %337 = vmatpush1.bf16.msra.mxu0 0
    %338 = vmatprep.subr.bf16.mxu0 0
    %339 = vmatpush1.bf16.msra.mxu0 0
    %340 = vmatprep.subr.bf16.mxu0 0
    %341 = vmatpush1.bf16.msra.mxu0 0
    %342 = vmatprep.subr.bf16.mxu0 0
    %343 = vmatpush1.bf16.msra.mxu0 0
    %344 = vmatprep.subr.bf16.mxu0 %v259
    %345 = vmatpush1.bf16.msra.mxu0 %v258
    %346 = vmatprep.subr.bf16.mxu0 %v252
    %347 = vmatpush1.bf16.msra.mxu0 %v251
    %348 = vmatprep.subr.bf16.mxu0 %v245
    %349 = vmatpush1.bf16.msra.mxu0 %v244
    %350 = vmatprep.subr.bf16.mxu0 %v238
    %351 = vmatpush1.bf16.msra.mxu0 %v237
    %352 = vmatprep.subr.bf16.mxu0 0
    %353 = vmatpush2.bf16.msra.mxu0 0
    %354 = vmatprep.subr.bf16.mxu0 0
    %355 = vmatpush2.bf16.msra.mxu0 0
    %356 = vmatprep.subr.bf16.mxu0 0
    %357 = vmatpush2.bf16.msra.mxu0 0
    %358 = vmatprep.subr.bf16.mxu0 0
    %359 = vmatpush2.bf16.msra.mxu0 0
    %360 = vmatprep.subr.bf16.mxu0 0
    %361 = vmatpush2.bf16.msra.mxu0 0
    %362 = vmatprep.subr.bf16.mxu0 0
    %363 = vmatpush2.bf16.msra.mxu0 0
    %364 = vmatprep.subr.bf16.mxu0 0
    %365 = vmatpush2.bf16.msra.mxu0 0
    %366 = vmatprep.subr.bf16.mxu0 0
    %367 = vmatpush2.bf16.msra.mxu0 0
    %368 = vmatprep.mubr.bf16.mxu0 0
    %369 = vmatmul.mubr.bf16.gmra.mxu0 %v293
    %v370 = vpop.f32.mrf.mxu0
    %v371 = vadd.f32 %v123, %v370
    %v372 = vpop.f32.mrf.mxu0
    %v373 = vadd.f32 %v127, %v372
    %v374 = vpop.f32.mrf.mxu0
    %v375 = vpop.f32.mrf.mxu0
    %376 = vdwg.mxu0
    %377 = vmatprep.subr.bf16.mxu0 0
    %378 = vmatpush1.bf16.msra.mxu0 0
    %379 = vmatprep.subr.bf16.mxu0 0
    %380 = vmatpush1.bf16.msra.mxu0 0
    %381 = vmatprep.subr.bf16.mxu0 0
    %382 = vmatpush1.bf16.msra.mxu0 0
    %383 = vmatprep.subr.bf16.mxu0 0
    %384 = vmatpush1.bf16.msra.mxu0 0
    %385 = vmatprep.subr.bf16.mxu0 %v261
    %386 = vmatpush1.bf16.msra.mxu0 %v260
    %387 = vmatprep.subr.bf16.mxu0 %v254
    %388 = vmatpush1.bf16.msra.mxu0 %v253
    %389 = vmatprep.subr.bf16.mxu0 %v247
    %390 = vmatpush1.bf16.msra.mxu0 %v246
    %391 = vmatprep.subr.bf16.mxu0 %v240
    %392 = vmatpush1.bf16.msra.mxu0 %v239
    %393 = vmatprep.subr.bf16.mxu0 0
    %394 = vmatpush2.bf16.msra.mxu0 0
    %395 = vmatprep.subr.bf16.mxu0 0
    %396 = vmatpush2.bf16.msra.mxu0 0
    %397 = vmatprep.subr.bf16.mxu0 0
    %398 = vmatpush2.bf16.msra.mxu0 0
    %399 = vmatprep.subr.bf16.mxu0 0
    %400 = vmatpush2.bf16.msra.mxu0 0
    %401 = vmatprep.subr.bf16.mxu0 0
    %402 = vmatpush2.bf16.msra.mxu0 0
    %403 = vmatprep.subr.bf16.mxu0 0
    %404 = vmatpush2.bf16.msra.mxu0 0
    %405 = vmatprep.subr.bf16.mxu0 0
    %406 = vmatpush2.bf16.msra.mxu0 0
    %407 = vmatprep.subr.bf16.mxu0 0
    %408 = vmatpush2.bf16.msra.mxu0 0
    %409 = vmatprep.mubr.bf16.mxu0 0
    %410 = vmatmul.mubr.bf16.gmra.mxu0 %v293
    %v411 = vpop.f32.mrf.mxu0
    %v412 = vadd.f32 %v131, %v411
    %v413 = vpop.f32.mrf.mxu0
    %v414 = vadd.f32 %v135, %v413
    %v415 = vpop.f32.mrf.mxu0
    %v416 = vpop.f32.mrf.mxu0
    %417 = vdwg.mxu0
    %418 = vmatprep.subr.bf16.mxu0 0
    %419 = vmatpush1.bf16.msra.mxu0 0
    %420 = vmatprep.subr.bf16.mxu0 0
    %421 = vmatpush1.bf16.msra.mxu0 0
    %422 = vmatprep.subr.bf16.mxu0 0
    %423 = vmatpush1.bf16.msra.mxu0 0
    %424 = vmatprep.subr.bf16.mxu0 0
    %425 = vmatpush1.bf16.msra.mxu0 0
    %426 = vmatprep.subr.bf16.mxu0 0
    %427 = vmatpush1.bf16.msra.mxu0 %v262
    %428 = vmatprep.subr.bf16.mxu0 0
    %429 = vmatpush1.bf16.msra.mxu0 %v255
    %430 = vmatprep.subr.bf16.mxu0 0
    %431 = vmatpush1.bf16.msra.mxu0 %v248
    %432 = vmatprep.subr.bf16.mxu0 0
    %433 = vmatpush1.bf16.msra.mxu0 %v241
    %434 = vmatprep.subr.bf16.mxu0 0
    %435 = vmatpush2.bf16.msra.mxu0 0
    %436 = vmatprep.subr.bf16.mxu0 0
    %437 = vmatpush2.bf16.msra.mxu0 0
    %438 = vmatprep.subr.bf16.mxu0 0
    %439 = vmatpush2.bf16.msra.mxu0 0
    %440 = vmatprep.subr.bf16.mxu0 0
    %441 = vmatpush2.bf16.msra.mxu0 0
    %442 = vmatprep.subr.bf16.mxu0 0
    %443 = vmatpush2.bf16.msra.mxu0 0
    %444 = vmatprep.subr.bf16.mxu0 0
    %445 = vmatpush2.bf16.msra.mxu0 0
    %446 = vmatprep.subr.bf16.mxu0 0
    %447 = vmatpush2.bf16.msra.mxu0 0
    %448 = vmatprep.subr.bf16.mxu0 0
    %449 = vmatpush2.bf16.msra.mxu0 0
    %450 = vmatprep.mubr.bf16.mxu0 0
    %451 = vmatmul.mubr.bf16.gmra.mxu0 %v293
    %v452 = vpop.f32.mrf.mxu0
    %v453 = vadd.f32 %v139, %v452
    %v454 = vpop.f32.mrf.mxu0
    %v455 = vpop.f32.mrf.mxu0
    %v456 = vpop.f32.mrf.mxu0
    %457 = vdwg.mxu0
    %458 = vst [vmem:[#allocation5] sm:$0xff] %v330
    %459 = vst [vmem:[#allocation5 + $0x8] sm:$0xff] %v332
    %460 = vst [vmem:[#allocation5 + $0x10] sm:$0xff] %v371
    %461 = vst [vmem:[#allocation5 + $0x18] sm:$0xff] %v373
    %462 = vst [vmem:[#allocation5 + $0x20] sm:$0xff] %v412
    %463 = vst [vmem:[#allocation5 + $0x28] sm:$0xff] %v414
    %464 = vst [vmem:[#allocation5 + $0x30] sm:$0xff] %v453
    // Predicated region
    $region26: #{tpu_custom_call.1} parent=1 // pred_check
      _
    $region27: #{tpu_custom_call.1} parent=1 // pred_check_branch
      %466 = sbr.rel (0) target = $region29
    $region28: #{tpu_custom_call.1} parent=1 // pred_region
      %s468 = ssub.s32 896, 896
      %469 = vsyncadd [#allocation4], %s468
      %s471 = sshll.u32 [#allocation5], 4
      %s472 = int_to_ptr.vmem [resolvable:$true] %s471
      %474 = dma.vmem_to_hbm [thread:$0]  %s472, 896, %s5, [#allocation4]
    $region29: #{tpu_custom_call.1} parent=1 // pred_fallthru
      _
    // Predicated region
    $region30: #{tpu_custom_call.1} parent=1 // pred_check
      _
    $region31: #{tpu_custom_call.1} parent=1 // pred_check_branch
      %476 = sbr.rel (0) target = $region33
    $region32: #{tpu_custom_call.1} parent=1 // pred_region
      %477 = dma.done [#allocation4], 896
    $region33: #{tpu_custom_call.1} parent=1 // pred_fallthru
      _
    %478 = vsyncpa [#allocation3], 1
    %479 = vsyncpa [#allocation4], 1

</llo_original>
